<compile_context>
chip_gen: v7x
topology: tpu7x:2x2x1
jax: 0.10.0
libtpu: 0.0.40
codegen_flags: <defaults>
</compile_context>

<pallas_src>
import functools
import math

import jax
import jax.numpy as jnp
from jax import lax
from jax.experimental import pallas as pl
from jax.experimental.pallas import tpu as pltpu


def _lm_head_kernel(x_ref, wd_ref, bd_ref, g_ref, b_ref, we_ref, bv_ref,
                    o_ref, h_ref):
    # x_ref:  (TM, H)   token tile
    # wd_ref: (H, H)    dense weight, pre-transposed in wrapper (y = x @ Wd)
    # bd_ref: (1, H)    dense bias
    # g_ref:  (1, H)    LayerNorm gamma
    # b_ref:  (1, H)    LayerNorm beta
    # we_ref: (TV, H)   embedding weight tile (PyTorch [V, H] layout)
    # bv_ref: (1, TV)   output bias tile
    # o_ref:  (TM, TV)  logits tile
    # h_ref:  (TM, H)   scratch with post-LayerNorm activations (MXU dtype)
    #
    # NOTE: caching h_ref across vocab tiles is only correct because the vocab
    # grid axis (program_id(1)) is the innermost, sequential ("arbitrary")
    # axis.  Do not reorder the grid or mark it "parallel".

    # --- transform (dense -> erf-gelu -> LayerNorm): once per token tile.
    @pl.when(pl.program_id(1) == 0)
    def _():
        h = jnp.dot(x_ref[...], wd_ref[...],
                    preferred_element_type=jnp.float32)
        h = h + bd_ref[...].astype(jnp.float32)

        # exact gelu (erf form, matches torch.nn.functional.gelu)
        h = h * 0.5 * (1.0 + lax.erf(h * (1.0 / math.sqrt(2.0))))

        # BertLayerNorm: (x - u) / sqrt(var + eps) * gamma + beta, eps=1e-5
        u = jnp.mean(h, axis=-1, keepdims=True)
        c = h - u
        s = jnp.mean(c * c, axis=-1, keepdims=True)
        h = c * lax.rsqrt(s + 1e-5)
        h = h * g_ref[...].astype(jnp.float32) + b_ref[...].astype(jnp.float32)

        # Cast ONCE into the MXU input dtype; every vocab tile reuses it.
        h_ref[...] = h.astype(h_ref.dtype)

    # --- decoder: (TM, H) . (TV, H)^T -> (TM, TV); contract last dims of both
    # (transposed-RHS matmul; Mosaic handles this on the MXU without an
    #  explicit transpose of the weight tile).
    logits = lax.dot_general(
        h_ref[...], we_ref[...],
        dimension_numbers=(((1,), (1,)), ((), ())),
        preferred_element_type=jnp.float32)
    o_ref[...] = (logits + bv_ref[...].astype(jnp.float32)).astype(o_ref.dtype)


def _cdiv(a, b):
    return -(-a // b)


def _round_up(a, m):
    return _cdiv(a, m) * m


@functools.lru_cache(maxsize=1)
def _tpu_info():
    """(vmem_capacity_bytes, tensorcores_per_chip) with safe fallbacks."""
    vmem = 64 * 1024 * 1024          # conservative default (v7x per-core)
    cores = 1
    try:
        info = pltpu.get_tpu_info()
        vmem = int(getattr(info, "vmem_capacity_bytes", vmem))
        for name in ("num_cores", "tensorcore_count", "cores_per_chip",
                     "num_tensorcores"):
            val = getattr(info, name, None)
            if val:
                cores = int(val)
                break
    except Exception:
        pass                          # not on TPU / API drift -> stay safe
    return vmem, cores


@functools.partial(jax.jit,
                   static_argnames=("tile_m", "tile_v", "matmul_dtype"))
def bert_lm_prediction_head(hidden_states, dense_w, dense_b, ln_gamma, ln_beta,
                            emb_w, out_bias, task_idx=None, *,
                            tile_m=None, tile_v=None, matmul_dtype=None):
    """hidden_states: [B, S, H]; dense_w: [H, H] (PyTorch layout, y = x W^T + b);
    emb_w: [V, H] (bert_model_embedding_weights); out_bias: [V].
    Returns logits [B, S, V] in hidden_states.dtype."""
    del task_idx                      # unused by the PyTorch forward pass
    B, S, H = hidden_states.shape
    V = emb_w.shape[0]
    N = B * S
    out_dtype = hidden_states.dtype

    x = hidden_states.reshape(N, H)
    wd_t = dense_w.T                  # tiny [H, H]; transposed once per call
    bd = dense_b.reshape(1, H)
    g = ln_gamma.reshape(1, H)
    bta = ln_beta.reshape(1, H)
    bv = out_bias.reshape(1, V)

    # One explicit MXU operand dtype (no implicit mixed-dtype promotion).
    # matmul_dtype=jnp.bfloat16 halves emb_w HBM traffic; accumulation is f32.
    if matmul_dtype is not None:
        x = x.astype(matmul_dtype)
        wd_t = wd_t.astype(matmul_dtype)
        emb_w = emb_w.astype(matmul_dtype)
    else:
        x = x.astype(emb_w.dtype)
        wd_t = wd_t.astype(emb_w.dtype)
    mxu_dtype = emb_w.dtype
    mxu_bytes = emb_w.dtype.itemsize
    out_bytes = out_dtype.itemsize

    vmem_cap, n_cores = _tpu_info()
    vmem_limit = int(vmem_cap * 0.85)     # generation-dependent scoped VMEM cap

    # ---- tile selection ------------------------------------------------------
    # emb_w is re-streamed once per token tile => make token tiles big.
    if tile_m is None:
        tile_m = 512
    if tile_v is None:
        tile_v = 4096 if vmem_cap >= 96 * 1024 * 1024 else 2048

    # Clip to the problem (a block equal to the full array dim is always legal).
    tile_m = min(tile_m, _round_up(N, 8))
    if tile_m >= N:
        tile_m = N
    tile_v = min(tile_v, _round_up(V, 128))
    if tile_v >= V:
        tile_v = V

    # Feed both TensorCores (v7x): the "parallel" token axis needs >=2 tiles.
    if n_cores >= 2 and _cdiv(N, tile_m) < 2 and N >= 16:
        tile_m = max(8, _round_up(_cdiv(N, 2), 8))

    # Shrink tiles until the working set fits the VMEM budget.
    def vmem_need(tm, tv):
        return (2 * tm * H * mxu_bytes        # x tile (double-buffered)
                + H * H * mxu_bytes           # dense W^T (single-buffered)
                + 2 * tv * H * mxu_bytes      # emb_w tile (double-buffered)
                + 2 * tm * tv * out_bytes     # logits tile (double-buffered)
                + tm * H * mxu_bytes          # post-LN scratch
                + 64 * 1024)                  # bias / gamma / beta + slack

    budget = int(vmem_limit * 0.9)
    while vmem_need(tile_m, tile_v) > budget and tile_v > 512:
        tile_v = max(512, _round_up(tile_v // 2, 128))
    while vmem_need(tile_m, tile_v) > budget and tile_m > 64:
        tile_m = max(64, _round_up(tile_m // 2, 8))

    # Vocab axis MUST stay innermost & "arbitrary" (see kernel note).
    grid = (_cdiv(N, tile_m), _cdiv(V, tile_v))

    const = dict(pipeline_mode=pl.Buffered(1))   # grid-constant operands:
                                                 # single buffer, never re-fetched
    out = pl.pallas_call(
        _lm_head_kernel,
        out_shape=jax.ShapeDtypeStruct((N, V), out_dtype),
        grid_spec=pltpu.PrefetchScalarGridSpec(
            num_scalar_prefetch=0,
            grid=grid,
            in_specs=[
                pl.BlockSpec((tile_m, H), lambda i, j: (i, 0)),       # token tile
                pl.BlockSpec((H, H), lambda i, j: (0, 0), **const),   # dense W^T
                pl.BlockSpec((1, H), lambda i, j: (0, 0), **const),   # dense b
                pl.BlockSpec((1, H), lambda i, j: (0, 0), **const),   # LN gamma
                pl.BlockSpec((1, H), lambda i, j: (0, 0), **const),   # LN beta
                pl.BlockSpec((tile_v, H), lambda i, j: (j, 0)),       # emb W tile
                pl.BlockSpec((1, tile_v), lambda i, j: (0, j)),       # out bias tile
            ],
            out_specs=pl.BlockSpec((tile_m, tile_v), lambda i, j: (i, j)),
            scratch_shapes=[pltpu.VMEM((tile_m, H), mxu_dtype)],
        ),
        compiler_params=pltpu.CompilerParams(
            dimension_semantics=("parallel", "arbitrary"),
            vmem_limit_bytes=vmem_limit,
        ),
    )(x, wd_t, bd, g, bta, emb_w, bv)

    # Output is exactly (N, V): partial boundary tiles are masked by Pallas,
    # so no padded-logits slice copy is needed.
    return out.reshape(B, S, V)


def _reference(hidden_states, dense_w, dense_b, ln_gamma, ln_beta, emb_w, out_bias):
    h = jnp.einsum("bsh,oh->bso", hidden_states, dense_w) + dense_b
    h = h * 0.5 * (1.0 + lax.erf(h / jnp.sqrt(2.0)))
    u = jnp.mean(h, axis=-1, keepdims=True)
    s = jnp.mean((h - u) ** 2, axis=-1, keepdims=True)
    h = (h - u) / jnp.sqrt(s + 1e-5)
    h = h * ln_gamma + ln_beta
    return jnp.einsum("bsh,vh->bsv", h, emb_w) + out_bias


if __name__ == "__main__":
    # --- test 1: small BERT-like shapes, default tiling --------------------
    B, S, H, V = 2, 8, 32, 128
    key = jax.random.PRNGKey(0)
    k1, k2, k3, k4 = jax.random.split(key, 4)

    hidden_states = jax.random.normal(k1, (B, S, H), dtype=jnp.float32)
    dense_w = 0.02 * jax.random.normal(k2, (H, H), dtype=jnp.float32)   # nn.Linear(H,H).weight
    dense_b = 0.01 * jax.random.normal(k4, (H,), dtype=jnp.float32)     # nn.Linear(H,H).bias
    ln_gamma = jnp.ones((H,), dtype=jnp.float32)                        # BertLayerNorm.weight
    ln_beta = jnp.zeros((H,), dtype=jnp.float32)                        # BertLayerNorm.bias
    emb_w = 0.02 * jax.random.normal(k3, (V, H), dtype=jnp.float32)     # embedding weights [V,H]
    out_bias = jnp.zeros((V,), dtype=jnp.float32)                       # self.bias (zeros)
    task_idx = jnp.zeros((B,), dtype=jnp.int32)                         # unused by forward

    logits = bert_lm_prediction_head(
        hidden_states, dense_w, dense_b, ln_gamma, ln_beta, emb_w, out_bias,
        task_idx)
    jax.block_until_ready(logits)
    ref = _reference(hidden_states, dense_w, dense_b, ln_gamma, ln_beta,
                     emb_w, out_bias)
    assert logits.shape == (B, S, V)
    assert jnp.allclose(logits, ref, atol=1e-4, rtol=1e-4)

    # --- test 2: odd shapes + small forced tiles (exercises partial tiles) --
    B2, S2, H2, V2 = 2, 7, 32, 200
    j1, j2, j3, j4, j5 = jax.random.split(jax.random.PRNGKey(1), 5)
    hs2 = jax.random.normal(j1, (B2, S2, H2), dtype=jnp.float32)
    dw2 = 0.02 * jax.random.normal(j2, (H2, H2), dtype=jnp.float32)
    db2 = 0.01 * jax.random.normal(j3, (H2,), dtype=jnp.float32)
    g2 = 1.0 + 0.1 * jax.random.normal(j4, (H2,), dtype=jnp.float32)
    b2 = 0.1 * jax.random.normal(j5, (H2,), dtype=jnp.float32)
    ew2 = 0.02 * jax.random.normal(j2, (V2, H2), dtype=jnp.float32)
    ob2 = 0.05 * jax.random.normal(j3, (V2,), dtype=jnp.float32)

    logits2 = bert_lm_prediction_head(hs2, dw2, db2, g2, b2, ew2, ob2,
                                      tile_m=8, tile_v=128)
    jax.block_until_ready(logits2)
    ref2 = _reference(hs2, dw2, db2, g2, b2, ew2, ob2)
    assert logits2.shape == (B2, S2, V2)
    assert jnp.allclose(logits2, ref2, atol=1e-4, rtol=1e-4)

    print("KERNEL_OK")
</pallas_src>

<mosaic_0001>
module attributes {stable_mosaic.version = 11 : i64} {
  func.func @_lm_head_kernel(%arg0: i32, %arg1: i32, %arg2: memref<16x32xf32, #tpu.memory_space<vmem>>, %arg3: memref<32x32xf32, #tpu.memory_space<vmem>>, %arg4: memref<1x32xf32, #tpu.memory_space<vmem>>, %arg5: memref<1x32xf32, #tpu.memory_space<vmem>>, %arg6: memref<1x32xf32, #tpu.memory_space<vmem>>, %arg7: memref<128x32xf32, #tpu.memory_space<vmem>>, %arg8: memref<1x128xf32, #tpu.memory_space<vmem>>, %arg9: memref<16x128xf32, #tpu.memory_space<vmem>>, %arg10: memref<16x32xf32, #tpu.memory_space<vmem>>) attributes {dimension_semantics = [#tpu.dimension_semantics<parallel>, #tpu.dimension_semantics<arbitrary>], iteration_bounds = array<i64: 1, 1>, scalar_prefetch = 0 : i64, scratch_operands = 1 : i64, tpu.core_type = #tpu.core_type<tc>, window_params = [{transform_indices = @transform_0, window_bounds = array<i64: 16, 32>}, {pipeline_mode = #tpu.pipeline_mode<synchronous>, transform_indices = @transform_1, window_bounds = array<i64: 32, 32>}, {pipeline_mode = #tpu.pipeline_mode<synchronous>, transform_indices = @transform_2, window_bounds = array<i64: 1, 32>}, {pipeline_mode = #tpu.pipeline_mode<synchronous>, transform_indices = @transform_3, window_bounds = array<i64: 1, 32>}, {pipeline_mode = #tpu.pipeline_mode<synchronous>, transform_indices = @transform_4, window_bounds = array<i64: 1, 32>}, {transform_indices = @transform_5, window_bounds = array<i64: 128, 32>}, {transform_indices = @transform_6, window_bounds = array<i64: 1, 128>}, {transform_indices = @transform_7, window_bounds = array<i64: 16, 128>}]} {
    %c0_i32 = arith.constant 0 : i32
    %0 = arith.cmpi eq, %arg1, %c0_i32 : i32
    %1 = arith.extui %0 : i1 to i32
    %c0_i32_0 = arith.constant 0 : i32
    %2 = arith.cmpi ne, %1, %c0_i32_0 : i32
    scf.if %2 {
      %c0_8 = arith.constant 0 : index
      %c0_9 = arith.constant 0 : index
      %10 = vector.load %arg2[%c0_8, %c0_9] : memref<16x32xf32, #tpu.memory_space<vmem>>, vector<16x32xf32>
      %c0_10 = arith.constant 0 : index
      %c0_11 = arith.constant 0 : index
      %11 = vector.load %arg3[%c0_10, %c0_11] : memref<32x32xf32, #tpu.memory_space<vmem>>, vector<32x32xf32>
      %cst_12 = arith.constant dense<0.000000e+00> : vector<16x32xf32>
      %12 = tpu.matmul %10, %11, %cst_12 {dimension_numbers = #tpu.dot_dimension_numbers<[1], [0], [0], [1], [0, 0, 1, 1], [], []>} : vector<16x32xf32>, vector<32x32xf32>, vector<16x32xf32> -> vector<16x32xf32>
      %c0_13 = arith.constant 0 : index
      %c0_14 = arith.constant 0 : index
      %13 = vector.load %arg4[%c0_13, %c0_14] : memref<1x32xf32, #tpu.memory_space<vmem>>, vector<1x32xf32>
      %14 = vector.broadcast %13 : vector<1x32xf32> to vector<16x32xf32>
      %15 = arith.addf %12, %14 : vector<16x32xf32>
      %cst_15 = arith.constant 5.000000e-01 : f32
      %16 = vector.broadcast %cst_15 : f32 to vector<16x32xf32>
      %17 = arith.mulf %15, %16 : vector<16x32xf32>
      %cst_16 = arith.constant 0.707106769 : f32
      %18 = vector.broadcast %cst_16 : f32 to vector<16x32xf32>
      %19 = arith.mulf %15, %18 : vector<16x32xf32>
      %20 = math.erf %19 : vector<16x32xf32>
      %cst_17 = arith.constant 1.000000e+00 : f32
      %21 = vector.broadcast %cst_17 : f32 to vector<16x32xf32>
      %22 = arith.addf %21, %20 : vector<16x32xf32>
      %23 = arith.mulf %17, %22 : vector<16x32xf32>
      %cst_18 = arith.constant dense<0.000000e+00> : vector<16xf32>
      %24 = vector.multi_reduction <add>, %23, %cst_18 [1] : vector<16x32xf32> to vector<16xf32>
      %25 = vector.shape_cast %24 : vector<16xf32> to vector<16x1xf32>
      %cst_19 = arith.constant 3.200000e+01 : f32
      %26 = vector.broadcast %cst_19 : f32 to vector<16x1xf32>
      %27 = arith.divf %25, %26 : vector<16x1xf32>
      %28 = vector.broadcast %27 : vector<16x1xf32> to vector<16x32xf32>
      %29 = arith.subf %23, %28 : vector<16x32xf32>
      %30 = arith.mulf %29, %29 : vector<16x32xf32>
      %cst_20 = arith.constant dense<0.000000e+00> : vector<16xf32>
      %31 = vector.multi_reduction <add>, %30, %cst_20 [1] : vector<16x32xf32> to vector<16xf32>
      %32 = vector.shape_cast %31 : vector<16xf32> to vector<16x1xf32>
      %cst_21 = arith.constant 3.200000e+01 : f32
      %33 = vector.broadcast %cst_21 : f32 to vector<16x1xf32>
      %34 = arith.divf %32, %33 : vector<16x1xf32>
      %cst_22 = arith.constant 9.99999974E-6 : f32
      %35 = vector.broadcast %cst_22 : f32 to vector<16x1xf32>
      %36 = arith.addf %34, %35 : vector<16x1xf32>
      %37 = math.rsqrt %36 : vector<16x1xf32>
      %38 = vector.broadcast %37 : vector<16x1xf32> to vector<16x32xf32>
      %39 = arith.mulf %29, %38 : vector<16x32xf32>
      %c0_23 = arith.constant 0 : index
      %c0_24 = arith.constant 0 : index
      %40 = vector.load %arg5[%c0_23, %c0_24] : memref<1x32xf32, #tpu.memory_space<vmem>>, vector<1x32xf32>
      %41 = vector.broadcast %40 : vector<1x32xf32> to vector<16x32xf32>
      %42 = arith.mulf %39, %41 : vector<16x32xf32>
      %c0_25 = arith.constant 0 : index
      %c0_26 = arith.constant 0 : index
      %43 = vector.load %arg6[%c0_25, %c0_26] : memref<1x32xf32, #tpu.memory_space<vmem>>, vector<1x32xf32>
      %44 = vector.broadcast %43 : vector<1x32xf32> to vector<16x32xf32>
      %45 = arith.addf %42, %44 : vector<16x32xf32>
      %c0_27 = arith.constant 0 : index
      %c0_28 = arith.constant 0 : index
      %46 = vector.load %arg10[%c0_27, %c0_28] : memref<16x32xf32, #tpu.memory_space<vmem>>, vector<16x32xf32>
      tpu.vector_store %arg10[%c0_27, %c0_28], %45 {strides = array<i32>} : memref<16x32xf32, #tpu.memory_space<vmem>>, vector<16x32xf32>,
    } else {
    }
    %c0 = arith.constant 0 : index
    %c0_1 = arith.constant 0 : index
    %3 = vector.load %arg10[%c0, %c0_1] : memref<16x32xf32, #tpu.memory_space<vmem>>, vector<16x32xf32>
    %c0_2 = arith.constant 0 : index
    %c0_3 = arith.constant 0 : index
    %4 = vector.load %arg7[%c0_2, %c0_3] : memref<128x32xf32, #tpu.memory_space<vmem>>, vector<128x32xf32>
    %cst = arith.constant dense<0.000000e+00> : vector<16x128xf32>
    %5 = tpu.matmul %3, %4, %cst {dimension_numbers = #tpu.dot_dimension_numbers<[1], [1], [0], [0], [0, 0, 1, 0], [], []>} : vector<16x32xf32>, vector<128x32xf32>, vector<16x128xf32> -> vector<16x128xf32>
    %c0_4 = arith.constant 0 : index
    %c0_5 = arith.constant 0 : index
    %6 = vector.load %arg8[%c0_4, %c0_5] : memref<1x128xf32, #tpu.memory_space<vmem>>, vector<1x128xf32>
    %7 = vector.broadcast %6 : vector<1x128xf32> to vector<16x128xf32>
    %8 = arith.addf %5, %7 : vector<16x128xf32>
    %c0_6 = arith.constant 0 : index
    %c0_7 = arith.constant 0 : index
    %9 = vector.load %arg9[%c0_6, %c0_7] : memref<16x128xf32, #tpu.memory_space<vmem>>, vector<16x128xf32>
    tpu.vector_store %arg9[%c0_6, %c0_7], %8 {strides = array<i32>} : memref<16x128xf32, #tpu.memory_space<vmem>>, vector<16x128xf32>,
    return
  }
  func.func @transform_0(%arg0: i32, %arg1: i32) -> (i32, i32) {
    %c0_i32 = arith.constant 0 : i32
    %c0_i32_0 = arith.constant 0 : i32
    return %arg0, %c0_i32 : i32, i32
  }
  func.func @transform_1(%arg0: i32, %arg1: i32) -> (i32, i32) {
    %c0_i32 = arith.constant 0 : i32
    %c0_i32_0 = arith.constant 0 : i32
    %c0_i32_1 = arith.constant 0 : i32
    return %c0_i32, %c0_i32_0 : i32, i32
  }
  func.func @transform_2(%arg0: i32, %arg1: i32) -> (i32, i32) {
    %c0_i32 = arith.constant 0 : i32
    %c0_i32_0 = arith.constant 0 : i32
    %c0_i32_1 = arith.constant 0 : i32
    return %c0_i32, %c0_i32_0 : i32, i32
  }
  func.func @transform_3(%arg0: i32, %arg1: i32) -> (i32, i32) {
    %c0_i32 = arith.constant 0 : i32
    %c0_i32_0 = arith.constant 0 : i32
    %c0_i32_1 = arith.constant 0 : i32
    return %c0_i32, %c0_i32_0 : i32, i32
  }
  func.func @transform_4(%arg0: i32, %arg1: i32) -> (i32, i32) {
    %c0_i32 = arith.constant 0 : i32
    %c0_i32_0 = arith.constant 0 : i32
    %c0_i32_1 = arith.constant 0 : i32
    return %c0_i32, %c0_i32_0 : i32, i32
  }
  func.func @transform_5(%arg0: i32, %arg1: i32) -> (i32, i32) {
    %c0_i32 = arith.constant 0 : i32
    %c0_i32_0 = arith.constant 0 : i32
    return %arg1, %c0_i32 : i32, i32
  }
  func.func @transform_6(%arg0: i32, %arg1: i32) -> (i32, i32) {
    %c0_i32 = arith.constant 0 : i32
    %c0_i32_0 = arith.constant 0 : i32
    return %c0_i32, %arg1 : i32, i32
  }
  func.func @transform_7(%arg0: i32, %arg1: i32) -> (i32, i32) {
    %c0_i32 = arith.constant 0 : i32
    return %arg0, %arg1 : i32, i32
  }
}

</mosaic_0001>

<llo_original>
// kernel: bert_lm_prediction_head.1
$region0: #{bert_lm_prediction_head.1}
  #allocation0 [shape = 'u32[]', space=smem, size = 0x4, offset = 0x4, fixed_abs, tag = 'smem constant byte address 0x4 - core index']
  #allocation1 [shape = 'u32[144,128]{1,0:T(1,128)}', space=vmem, size = 0x12000, scoped, tag = 'internal scratch']
  #allocation2 [shape = 'f32[16,32]{1,0:T(8,128)}', space=vmem, size = 0x2000, scoped, tag = 'scratch operand']
  %s0 = inlined_call_operand.vmem [shape: f32[16,32], index: 0, kind: input, shape index: {}]
  %s1 = inlined_call_operand.vmem [shape: f32[32,32], index: 1, kind: input, shape index: {}]
  %s2 = inlined_call_operand.vmem [shape: f32[1,32], index: 2, kind: input, shape index: {}]
  %s3 = inlined_call_operand.vmem [shape: f32[1,32], index: 3, kind: input, shape index: {}]
  %s4 = inlined_call_operand.vmem [shape: f32[1,32], index: 4, kind: input, shape index: {}]
  %s5 = inlined_call_operand.vmem [shape: f32[128,32], index: 5, kind: input, shape index: {}]
  %s6 = inlined_call_operand.vmem [shape: f32[1,128], index: 6, kind: input, shape index: {}]
  %s7 = inlined_call_operand.hbm [shape: f32[16,128], index: 7, kind: output, shape index: {}]
  %s8 = sld [smem:[#allocation0]]
  $region42: #{bert_lm_prediction_head.1} parent=0
    _
  %s10 = ssub.s32 1, %s8
  %s11 = scalar_select 0, %s10, %s8
  $region1: #{bert_lm_prediction_head.1} parent=0
    #allocation3 [shape = 'u8[8192]{0}', space=vmem, size = 0x2000, scoped, tag = 'output window, operand 0, single buffered']
    #allocation4 [shape = 's32[1]{0}', space=sflag, size = 0x4, scoped, tag = 'scoped memory for bert_lm_prediction_head.1']
    %12 = vsyncpa [#allocation4], 0
    // Predicated region
    $region2: #{bert_lm_prediction_head.1} parent=1 // pred_check
      _
    $region3: #{bert_lm_prediction_head.1} parent=1 // pred_check_branch
      %14 = sbr.rel (0) target = $region5
    $region4: #{bert_lm_prediction_head.1} parent=1 // pred_region
      _
    $region5: #{bert_lm_prediction_head.1} parent=1 // pred_fallthru
      _
    // Predicated region
    $region6: #{bert_lm_prediction_head.1} parent=1 // pred_check
      _
    $region7: #{bert_lm_prediction_head.1} parent=1 // pred_check_branch
      %16 = sbr.rel (0) target = $region9
    $region8: #{bert_lm_prediction_head.1} parent=1 // pred_region
      _
    $region9: #{bert_lm_prediction_head.1} parent=1 // pred_fallthru
      _
    // Predicated region
    $region10: #{bert_lm_prediction_head.1} parent=1 // pred_check
      _
    $region11: #{bert_lm_prediction_head.1} parent=1 // pred_check_branch
      %18 = sbr.rel (0) target = $region13
    $region12: #{bert_lm_prediction_head.1} parent=1 // pred_region
      _
    $region13: #{bert_lm_prediction_head.1} parent=1 // pred_fallthru
      _
    // Predicated region
    $region14: #{bert_lm_prediction_head.1} parent=1 // pred_check
      _
    $region15: #{bert_lm_prediction_head.1} parent=1 // pred_check_branch
      %20 = sbr.rel (0) target = $region17
    $region16: #{bert_lm_prediction_head.1} parent=1 // pred_region
      _
    $region17: #{bert_lm_prediction_head.1} parent=1 // pred_fallthru
      _
    // Predicated region
    $region18: #{bert_lm_prediction_head.1} parent=1 // pred_check
      _
    $region19: #{bert_lm_prediction_head.1} parent=1 // pred_check_branch
      %22 = sbr.rel (0) target = $region21
    $region20: #{bert_lm_prediction_head.1} parent=1 // pred_region
      _
    $region21: #{bert_lm_prediction_head.1} parent=1 // pred_fallthru
      _
    // Predicated region
    $region22: #{bert_lm_prediction_head.1} parent=1 // pred_check
      _
    $region23: #{bert_lm_prediction_head.1} parent=1 // pred_check_branch
      %24 = sbr.rel (0) target = $region25
    $region24: #{bert_lm_prediction_head.1} parent=1 // pred_region
      _
    $region25: #{bert_lm_prediction_head.1} parent=1 // pred_fallthru
      _
    // Predicated region
    $region26: #{bert_lm_prediction_head.1} parent=1 // pred_check
      _
    $region27: #{bert_lm_prediction_head.1} parent=1 // pred_check_branch
      %26 = sbr.rel (0) target = $region29
    $region28: #{bert_lm_prediction_head.1} parent=1 // pred_region
      _
    $region29: #{bert_lm_prediction_head.1} parent=1 // pred_fallthru
      _
    %p27 = scmp.eq.s32.totalorder 0, 0
    // Predicated region
    $region30: #{bert_lm_prediction_head.1} parent=1 // pred_check
      %p28 = pneg %p27
    $region31: #{bert_lm_prediction_head.1} parent=1 // pred_check_branch
      %30 = sbr.rel (%p28) target = $region33
    $region32: #{bert_lm_prediction_head.1} parent=1 // pred_region
      %v31 = vld [vmem:[%s0] sm:$0xff]
      %v32 = vld [vmem:[%s0 + $0x8] sm:$0xff]
      %v33 = vld [vmem:[%s1] sm:$0xff]
      %v34 = vld [vmem:[%s1 + $0x8] sm:$0xff]
      %v35 = vld [vmem:[%s1 + $0x10] sm:$0xff]
      %v36 = vld [vmem:[%s1 + $0x18] sm:$0xff]
      %v37 = vld [vmem:[%s2] sm:$0x1]
      %v39 = vlaneseq
      %v40 = vshrl.u32 %v39, 7
      %v41 = vsub.s32 0, %v40
      %v42 = vrot.slane %v37, %v41
      %vm44 = vcmask 261120
      %v46 = vsel %vm44, %v31, 0
      %v49 = vsel %vm44, %v32, 0
      %51 = vmatprep.subr.mxu0 0.0
      %52 = vmatpush1.msra.mxu0 %v33
      %53 = vmatprep.subr.mxu0 0.0
      %54 = vmatpush1.msra.mxu0 %v34
      %55 = vmatprep.subr.mxu0 0.0
      %56 = vmatpush1.msra.mxu0 %v35
      %57 = vmatprep.subr.mxu0 0.0
      %58 = vmatpush1.msra.mxu0 %v36
      %59 = vmatprep.subr.mxu0 0.0
      %60 = vmatpush1.msra.mxu0 0.0
      %61 = vmatprep.subr.mxu0 0.0
      %62 = vmatpush1.msra.mxu0 0.0
      %63 = vmatprep.subr.mxu0 0.0
      %64 = vmatpush1.msra.mxu0 0.0
      %65 = vmatprep.subr.mxu0 0.0
      %66 = vmatpush1.msra.mxu0 0.0
      %67 = vmatprep.subr.mxu0 0.0
      %68 = vmatpush1.msra.mxu0 0.0
      %69 = vmatprep.subr.mxu0 0.0
      %70 = vmatpush1.msra.mxu0 0.0
      %71 = vmatprep.subr.mxu0 0.0
      %72 = vmatpush1.msra.mxu0 0.0
      %73 = vmatprep.subr.mxu0 0.0
      %74 = vmatpush1.msra.mxu0 0.0
      %75 = vmatprep.subr.mxu0 0.0
      %76 = vmatpush1.msra.mxu0 0.0
      %77 = vmatprep.subr.mxu0 0.0
      %78 = vmatpush1.msra.mxu0 0.0
      %79 = vmatprep.subr.mxu0 0.0
      %80 = vmatpush1.msra.mxu0 0.0
      %81 = vmatprep.subr.mxu0 0.0
      %82 = vmatpush1.msra.mxu0 0.0
      %83 = vmatprep.subr.mxu0 0.0
      %84 = vmatpush1.msra.mxu0 0.0
      %85 = vmatprep.subr.mxu0 0.0
      %86 = vmatpush1.msra.mxu0 0.0
      %87 = vmatprep.subr.mxu0 0.0
      %88 = vmatpush1.msra.mxu0 0.0
      %89 = vmatprep.subr.mxu0 0.0
      %90 = vmatpush1.msra.mxu0 0.0
      %91 = vmatprep.subr.mxu0 0.0
      %92 = vmatpush1.msra.mxu0 0.0
      %93 = vmatprep.subr.mxu0 0.0
      %94 = vmatpush1.msra.mxu0 0.0
      %95 = vmatprep.subr.mxu0 0.0
      %96 = vmatpush1.msra.mxu0 0.0
      %97 = vmatprep.subr.mxu0 0.0
      %98 = vmatpush1.msra.mxu0 0.0
      %99 = vmatprep.subr.mxu0 0.0
      %100 = vmatpush1.msra.mxu0 0.0
      %101 = vmatprep.subr.mxu0 0.0
      %102 = vmatpush1.msra.mxu0 0.0
      %103 = vmatprep.subr.mxu0 0.0
      %104 = vmatpush1.msra.mxu0 0.0
      %105 = vmatprep.subr.mxu0 0.0
      %106 = vmatpush1.msra.mxu0 0.0
      %107 = vmatprep.subr.mxu0 0.0
      %108 = vmatpush1.msra.mxu0 0.0
      %109 = vmatprep.subr.mxu0 0.0
      %110 = vmatpush1.msra.mxu0 0.0
      %111 = vmatprep.subr.mxu0 0.0
      %112 = vmatpush1.msra.mxu0 0.0
      %113 = vmatprep.subr.mxu0 0.0
      %114 = vmatpush1.msra.mxu0 0.0
      %115 = vmatprep.mubr.f32.mxu0 0.0
      %116 = vmatmul.mubr.f32.gmra.mrb[0].mxu0 %v46
      %v117 = vpop.f32.mrb[0].mxu0
      %v118 = vadd.f32 %v42, %v117
      %v119 = vpop.f32.mrb[0].mxu0
      %120 = vmatprep.mubr.f32.mxu0 0.0
      %121 = vmatmul.mubr.f32.gmra.mrb[0].mxu0 %v49
      %v122 = vpop.f32.mrb[0].mxu0
      %v123 = vadd.f32 %v42, %v122
      %v124 = vpop.f32.mrb[0].mxu0
      %125 = vdwg.mxu0
      %v126 = vmul.f32 %v118, 0.5
      %v127 = vmul.f32 %v123, 0.5
      %v128 = vmul.f32 %v118, 0.70710677
      %v129 = vmul.f32 %v123, 0.70710677
      %v130 = verf.f32.pop %v128
      %v131 = verf.f32.pop %v129
      %v132 = vadd.f32 %v130, 1.0
      %v133 = vadd.f32 %v131, 1.0
      %v134 = vmul.f32 %v126, %v132
      %v135 = vmul.f32 %v127, %v133
      %v136 = vsel %vm44, %v134, 0.0
      %137 = vadd.xlane.f32.xlu0 %v136
      %v138 = vpop.xlane.xlu0 %137
      %v139 = vsel %vm44, %v135, 0.0
      %140 = vadd.xlane.f32.xlu0 %v139
      %v141 = vpop.xlane.xlu0 %140
      %v142 = vrcp.pop 32.0
      %v143 = vmul.f32 %v138, %v142
      %v144 = vmul.f32 %v141, %v142
      %v145 = vsub.f32 %v134, %v143
      %v146 = vsub.f32 %v135, %v144
      %v147 = vmul.f32 %v145, %v145
      %v148 = vmul.f32 %v146, %v146
      %v149 = vsel %vm44, %v147, 0.0
      %150 = vadd.xlane.f32.xlu0 %v149
      %v151 = vpop.xlane.xlu0 %150
      %v152 = vsel %vm44, %v148, 0.0
      %153 = vadd.xlane.f32.xlu0 %v152
      %v154 = vpop.xlane.xlu0 %153
      %v155 = vmul.f32 %v151, %v142
      %v156 = vmul.f32 %v154, %v142
      %v157 = vadd.f32 %v155, 1e-05
      %v158 = vadd.f32 %v156, 1e-05
      %v159 = vrsqrt.pop %v157
      %v160 = vrsqrt.pop %v158
      %v161 = vmul.f32 %v145, %v159
      %v162 = vmul.f32 %v146, %v160
      %v163 = vld [vmem:[%s3] sm:$0x1]
      %v165 = vlaneseq
      %v166 = vshrl.u32 %v165, 7
      %v167 = vsub.s32 0, %v166
      %v168 = vrot.slane %v163, %v167
      %v170 = vmul.f32 %v161, %v168
      %v171 = vmul.f32 %v162, %v168
      %v172 = vld [vmem:[%s4] sm:$0x1]
      %v174 = vlaneseq
      %v175 = vshrl.u32 %v174, 7
      %v176 = vsub.s32 0, %v175
      %v177 = vrot.slane %v172, %v176
      %v179 = vadd.f32 %v170, %v177
      %v180 = vadd.f32 %v171, %v177
      %181 = vst.msk [vmem:[#allocation2] sm:$0xff] %vm44, %v179
      %182 = vst.msk [vmem:[#allocation2 + $0x8] sm:$0xff] %vm44, %v180
    $region33: #{bert_lm_prediction_head.1} parent=1 // pred_fallthru
      _
    %v183 = vld [vmem:[#allocation2] sm:$0xff]
    %v184 = vld [vmem:[#allocation2 + $0x8] sm:$0xff]
    %v185 = vld [vmem:[%s5] sm:$0xff]
    %v186 = vld [vmem:[%s5 + $0x8] sm:$0xff]
    %v187 = vld [vmem:[%s5 + $0x10] sm:$0xff]
    %v188 = vld [vmem:[%s5 + $0x18] sm:$0xff]
    %v189 = vld [vmem:[%s5 + $0x20] sm:$0xff]
    %v190 = vld [vmem:[%s5 + $0x28] sm:$0xff]
    %v191 = vld [vmem:[%s5 + $0x30] sm:$0xff]
    %v192 = vld [vmem:[%s5 + $0x38] sm:$0xff]
    %v193 = vld [vmem:[%s5 + $0x40] sm:$0xff]
    %v194 = vld [vmem:[%s5 + $0x48] sm:$0xff]
    %v195 = vld [vmem:[%s5 + $0x50] sm:$0xff]
    %v196 = vld [vmem:[%s5 + $0x58] sm:$0xff]
    %v197 = vld [vmem:[%s5 + $0x60] sm:$0xff]
    %v198 = vld [vmem:[%s5 + $0x68] sm:$0xff]
    %v199 = vld [vmem:[%s5 + $0x70] sm:$0xff]
    %v200 = vld [vmem:[%s5 + $0x78] sm:$0xff]
    %v201 = vld [vmem:[%s6] sm:$0x1]
    %v203 = vlaneseq
    %v204 = vshrl.u32 %v203, 7
    %v205 = vsub.s32 0, %v204
    %v206 = vrot.slane %v201, %v205
    %vm208 = vcmask 261120
    %v210 = vsel %vm208, %v183, 0
    %v213 = vsel %vm208, %v184, 0
    %v216 = vsel %vm208, %v185, 0
    %v219 = vsel %vm208, %v186, 0
    %v222 = vsel %vm208, %v187, 0
    %v225 = vsel %vm208, %v188, 0
    %v228 = vsel %vm208, %v189, 0
    %v231 = vsel %vm208, %v190, 0
    %v234 = vsel %vm208, %v191, 0
    %v237 = vsel %vm208, %v192, 0
    %v240 = vsel %vm208, %v193, 0
    %v243 = vsel %vm208, %v194, 0
    %v246 = vsel %vm208, %v195, 0
    %v249 = vsel %vm208, %v196, 0
    %v252 = vsel %vm208, %v197, 0
    %v255 = vsel %vm208, %v198, 0
    %v258 = vsel %vm208, %v199, 0
    %v261 = vsel %vm208, %v200, 0
    %263 = vmatprep.subr.mxu0 0.0
    %264 = vmatpush1.xpose.msra.mxu0 %v216
    %265 = vmatprep.subr.mxu0 0.0
    %266 = vmatpush1.xpose.msra.mxu0 %v219
    %267 = vmatprep.subr.mxu0 0.0
    %268 = vmatpush1.xpose.msra.mxu0 %v222
    %269 = vmatprep.subr.mxu0 0.0
    %270 = vmatpush1.xpose.msra.mxu0 %v225
    %271 = vmatprep.subr.mxu0 0.0
    %272 = vmatpush1.xpose.msra.mxu0 %v228
    %273 = vmatprep.subr.mxu0 0.0
    %274 = vmatpush1.xpose.msra.mxu0 %v231
    %275 = vmatprep.subr.mxu0 0.0
    %276 = vmatpush1.xpose.msra.mxu0 %v234
    %277 = vmatprep.subr.mxu0 0.0
    %278 = vmatpush1.xpose.msra.mxu0 %v237
    %279 = vmatprep.subr.mxu0 0.0
    %280 = vmatpush1.xpose.msra.mxu0 %v240
    %281 = vmatprep.subr.mxu0 0.0
    %282 = vmatpush1.xpose.msra.mxu0 %v243
    %283 = vmatprep.subr.mxu0 0.0
    %284 = vmatpush1.xpose.msra.mxu0 %v246
    %285 = vmatprep.subr.mxu0 0.0
    %286 = vmatpush1.xpose.msra.mxu0 %v249
    %287 = vmatprep.subr.mxu0 0.0
    %288 = vmatpush1.xpose.msra.mxu0 %v252
    %289 = vmatprep.subr.mxu0 0.0
    %290 = vmatpush1.xpose.msra.mxu0 %v255
    %291 = vmatprep.subr.mxu0 0.0
    %292 = vmatpush1.xpose.msra.mxu0 %v258
    %293 = vmatprep.subr.mxu0 0.0
    %294 = vmatpush1.xpose.msra.mxu0 %v261
    %295 = vmatprep.subr.mxu0 0.0
    %296 = vmatpush1.xpose.msra.mxu0 0.0
    %297 = vmatprep.subr.mxu0 0.0
    %298 = vmatpush1.xpose.msra.mxu0 0.0
    %299 = vmatprep.subr.mxu0 0.0
    %300 = vmatpush1.xpose.msra.mxu0 0.0
    %301 = vmatprep.subr.mxu0 0.0
    %302 = vmatpush1.xpose.msra.mxu0 0.0
    %303 = vmatprep.subr.mxu0 0.0
    %304 = vmatpush1.xpose.msra.mxu0 0.0
    %305 = vmatprep.subr.mxu0 0.0
    %306 = vmatpush1.xpose.msra.mxu0 0.0
    %307 = vmatprep.subr.mxu0 0.0
    %308 = vmatpush1.xpose.msra.mxu0 0.0
    %309 = vmatprep.subr.mxu0 0.0
    %310 = vmatpush1.xpose.msra.mxu0 0.0
    %311 = vmatprep.subr.mxu0 0.0
    %312 = vmatpush1.xpose.msra.mxu0 0.0
    %313 = vmatprep.subr.mxu0 0.0
    %314 = vmatpush1.xpose.msra.mxu0 0.0
    %315 = vmatprep.subr.mxu0 0.0
    %316 = vmatpush1.xpose.msra.mxu0 0.0
    %317 = vmatprep.subr.mxu0 0.0
    %318 = vmatpush1.xpose.msra.mxu0 0.0
    %319 = vmatprep.subr.mxu0 0.0
    %320 = vmatpush1.xpose.msra.mxu0 0.0
    %321 = vmatprep.subr.mxu0 0.0
    %322 = vmatpush1.xpose.msra.mxu0 0.0
    %323 = vmatprep.subr.mxu0 0.0
    %324 = vmatpush1.xpose.msra.mxu0 0.0
    %325 = vmatprep.subr.mxu0 0.0
    %326 = vmatpush1.xpose.msra.mxu0 0.0
    %327 = vmatprep.mubr.f32.mxu0 0.0
    %328 = vmatmul.mubr.f32.gmra.mrb[0].mxu0 %v210
    %v329 = vpop.f32.mrb[0].mxu0
    %v330 = vadd.f32 %v206, %v329
    %v331 = vpop.f32.mrb[0].mxu0
    %332 = vmatprep.mubr.f32.mxu0 0.0
    %333 = vmatmul.mubr.f32.gmra.mrb[0].mxu0 %v213
    %v334 = vpop.f32.mrb[0].mxu0
    %v335 = vadd.f32 %v206, %v334
    %v336 = vpop.f32.mrb[0].mxu0
    %337 = vdwg.mxu0
    %338 = vst [vmem:[#allocation3] sm:$0xff] %v330
    %339 = vst [vmem:[#allocation3 + $0x8] sm:$0xff] %v335
    // Predicated region
    $region34: #{bert_lm_prediction_head.1} parent=1 // pred_check
      _
    $region35: #{bert_lm_prediction_head.1} parent=1 // pred_check_branch
      %341 = sbr.rel (0) target = $region37
    $region36: #{bert_lm_prediction_head.1} parent=1 // pred_region
      %s343 = ssub.s32 256, 256
      %344 = vsyncadd [#allocation4], %s343
      %s345 = sshll.u32 [#allocation3], 4
      %s346 = int_to_ptr.vmem [resolvable:$true] %s345
      %351 = dma.vmem_to_hbm [thread:$0]  %s346, 256, %s7, [#allocation4], 128, 128, 8
    $region37: #{bert_lm_prediction_head.1} parent=1 // pred_fallthru
      _
    // Predicated region
    $region38: #{bert_lm_prediction_head.1} parent=1 // pred_check
      _
    $region39: #{bert_lm_prediction_head.1} parent=1 // pred_check_branch
      %353 = sbr.rel (0) target = $region41
    $region40: #{bert_lm_prediction_head.1} parent=1 // pred_region
      %354 = dma.done [#allocation4], 256
    $region41: #{bert_lm_prediction_head.1} parent=1 // pred_fallthru
      _
    %355 = vsyncpa [#allocation4], 1

</llo_original>
